<compile_context>
chip_gen: v7x
topology: tpu7x:2x2x1
jax: 0.10.0
libtpu: 0.0.40
codegen_flags: <defaults>
</compile_context>

<pallas_src>
import functools

import jax
import jax.numpy as jnp
from jax import lax
from jax.experimental import pallas as pl
from jax.experimental.pallas import tpu as pltpu


def _conv3x3_matmul_kernel(lhs_ref, w_ref, b_ref, o_ref, *, m_block, chunk):
    """One M-block per grid step.

    lhs_ref: (m_block, 9*Cin)   im2col patches, bf16 (built in the wrapper)
    w_ref:   (9*Cin, Cout_p)    im2col-flattened weights, bf16 (zero-padded columns)
    b_ref:   (1, Cout_p)        bias, f32 (zero-padded)
    o_ref:   (m_block, Cout_p)  output, bf16; Cout_p % 128 == 0 -> lane-dense stores
    """
    w = w_ref[...]                               # (K, Cout_p) bf16, hoisted out of the loop
    b = b_ref[...].astype(jnp.float32)           # (1, Cout_p)  f32
    n_chunks = m_block // chunk

    def body(i, carry):
        r = pl.multiple_of(i * chunk, chunk)     # sublane-aligned dynamic start
        lhs = lhs_ref[pl.ds(r, chunk), :]                                  # (chunk, K) bf16
        acc = jnp.dot(lhs, w, preferred_element_type=jnp.float32)          # (chunk, Cout_p) f32
        o_ref[pl.ds(r, chunk), :] = (acc + b).astype(o_ref.dtype)          # lane-dense bf16 vst
        return carry

    # Chunked epilogue: bounds vreg live ranges (per review), unrolled for LLO visibility.
    lax.fori_loop(0, n_chunks, body, 0, unroll=True)


def _default_m_blocks():
    """2 M-blocks on dual-TensorCore chips (v7x), 1 on single-TC chips (v5e/v6e)."""
    try:
        kind = jax.devices()[0].device_kind.lower()
    except Exception:
        return 1
    return 2 if "v7" in kind else 1


def conv3x3_pallas(x_nchw, weight_oihw, bias, *, use_refl=True, m_blocks=None):
    """Forward pass of Conv3x3. x_nchw: (N, Cin, H, W) -> (N, Cout, H, W)."""
    N, Cin, H, W = x_nchw.shape
    Cout = weight_oihw.shape[0]
    K = 9 * Cin
    Cout_p = ((Cout + 127) // 128) * 128         # lane-dense output width
    M = N * H * W

    if m_blocks is None:
        m_blocks = _default_m_blocks()
    if M % m_blocks != 0:
        m_blocks = 1
    m_block = M // m_blocks
    chunk = 128 if (m_block % 128 == 0) else m_block

    # --- wrapper glue (fused by XLA): layout + halo + im2col + bf16 cast ---
    x_nhwc = jnp.transpose(x_nchw, (0, 2, 3, 1))
    pad_mode = "reflect" if use_refl else "constant"
    x_pad = jnp.pad(x_nhwc, ((0, 0), (1, 1), (1, 1), (0, 0)), mode=pad_mode)
    # Patch order (dy, dx, cin) matches the (kh, kw, Cin, Cout) weight reshape below.
    taps = [x_pad[:, dy:dy + H, dx:dx + W, :] for dy in range(3) for dx in range(3)]
    lhs = jnp.concatenate(taps, axis=-1).reshape(M, K).astype(jnp.bfloat16)

    # OIHW -> (kh, kw, Cin, Cout) -> (9*Cin, Cout); zero-pad Cout -> Cout_p; bf16 for MXU.
    w_flat = jnp.transpose(weight_oihw, (2, 3, 1, 0)).reshape(K, Cout)
    w_flat = jnp.pad(w_flat, ((0, 0), (0, Cout_p - Cout))).astype(jnp.bfloat16)
    b_pad = jnp.pad(bias.reshape(1, Cout),
                    ((0, 0), (0, Cout_p - Cout))).astype(jnp.float32)

    kernel = functools.partial(_conv3x3_matmul_kernel, m_block=m_block, chunk=chunk)

    out = pl.pallas_call(
        kernel,
        out_shape=jax.ShapeDtypeStruct((M, Cout_p), jnp.bfloat16),
        grid_spec=pltpu.PrefetchScalarGridSpec(
            num_scalar_prefetch=0,
            grid=(m_blocks,),
            in_specs=[
                pl.BlockSpec((m_block, K), lambda i: (i, 0)),
                pl.BlockSpec((K, Cout_p), lambda i: (0, 0)),   # grid-invariant weights
                pl.BlockSpec((1, Cout_p), lambda i: (0, 0)),   # grid-invariant bias
            ],
            out_specs=pl.BlockSpec((m_block, Cout_p), lambda i: (i, 0)),
        ),
        compiler_params=pltpu.CompilerParams(
            dimension_semantics=("parallel",),
        ),
    )(lhs, w_flat, b_pad)

    # Slice valid channels back out and return NCHW in the input dtype (glue).
    out_nhwc = out[:, :Cout].reshape(N, H, W, Cout)
    return jnp.transpose(out_nhwc, (0, 3, 1, 2)).astype(x_nchw.dtype)


def _reference_conv3x3(x_nchw, weight_oihw, bias, *, use_refl=True):
    """Pure-JAX f32 reference (lax.conv) for verification."""
    pad_mode = "reflect" if use_refl else "constant"
    x_pad = jnp.pad(x_nchw, ((0, 0), (0, 0), (1, 1), (1, 1)), mode=pad_mode)
    out = jax.lax.conv_general_dilated(
        x_pad, weight_oihw,
        window_strides=(1, 1), padding="VALID",
        dimension_numbers=("NCHW", "OIHW", "NCHW"),
    )
    return out + bias[None, :, None, None]


if __name__ == "__main__":
    # Small shapes consistent with the module: batch=2, in_channels=4,
    # out_channels=8, spatial=16x16.
    N, Cin, Cout, H, W = 2, 4, 8, 16, 16

    key = jax.random.PRNGKey(0)
    kx, kw, kb = jax.random.split(key, 3)

    x = jax.random.normal(kx, (N, Cin, H, W), dtype=jnp.float32)
    # Deterministic synthetic parameters (shapes match nn.Conv2d(Cin, Cout, 3)).
    weight = jax.random.normal(kw, (Cout, Cin, 3, 3), dtype=jnp.float32) * 0.1
    bias = jax.random.normal(kb, (Cout,), dtype=jnp.float32) * 0.1

    out = jax.block_until_ready(conv3x3_pallas(x, weight, bias, use_refl=True))
    ref = jax.block_until_ready(_reference_conv3x3(x, weight, bias, use_refl=True))

    assert out.shape == (N, Cout, H, W)
    # bf16 MXU inputs + bf16 output store with f32 accumulation -> ~1e-2-level agreement.
    assert jnp.allclose(out, ref, atol=3e-2, rtol=3e-2), "mismatch vs reference"

    print("KERNEL_OK")
</pallas_src>

<mosaic_0001>
module attributes {stable_mosaic.version = 11 : i64} {
  func.func @_conv3x3_matmul_kernel(%arg0: i32, %arg1: memref<512x36xbf16, #tpu.memory_space<vmem>>, %arg2: memref<36x128xbf16, #tpu.memory_space<vmem>>, %arg3: memref<1x128xf32, #tpu.memory_space<vmem>>, %arg4: memref<512x128xbf16, #tpu.memory_space<vmem>>) attributes {dimension_semantics = [#tpu.dimension_semantics<parallel>], iteration_bounds = array<i64: 1>, scalar_prefetch = 0 : i64, scratch_operands = 0 : i64, tpu.core_type = #tpu.core_type<tc>, window_params = [{transform_indices = @transform_0, window_bounds = array<i64: 512, 36>}, {pipeline_mode = #tpu.pipeline_mode<synchronous>, transform_indices = @transform_1, window_bounds = array<i64: 36, 128>}, {pipeline_mode = #tpu.pipeline_mode<synchronous>, transform_indices = @transform_2, window_bounds = array<i64: 1, 128>}, {transform_indices = @transform_3, window_bounds = array<i64: 512, 128>}]} {
    %c0 = arith.constant 0 : index
    %c0_0 = arith.constant 0 : index
    %0 = vector.load %arg2[%c0, %c0_0] : memref<36x128xbf16, #tpu.memory_space<vmem>>, vector<36x128xbf16>
    %c0_1 = arith.constant 0 : index
    %c0_2 = arith.constant 0 : index
    %1 = vector.load %arg3[%c0_1, %c0_2] : memref<1x128xf32, #tpu.memory_space<vmem>>, vector<1x128xf32>
    %c0_i32 = arith.constant 0 : i32
    %c128_i32 = arith.constant 128 : i32
    %2 = arith.muli %c0_i32, %c128_i32 : i32
    %3 = tpu.assume_multiple %2, 128 : i32
    %4 = arith.index_cast %3 : i32 to index
    %c0_3 = arith.constant 0 : index
    %5 = vector.load %arg1[%4, %c0_3] : memref<512x36xbf16, #tpu.memory_space<vmem>>, vector<128x36xbf16>
    %cst = arith.constant dense<0.000000e+00> : vector<128x128xf32>
    %6 = tpu.matmul %5, %0, %cst {dimension_numbers = #tpu.dot_dimension_numbers<[1], [0], [0], [1], [0, 0, 1, 1], [], []>} : vector<128x36xbf16>, vector<36x128xbf16>, vector<128x128xf32> -> vector<128x128xf32>
    %7 = vector.broadcast %1 : vector<1x128xf32> to vector<128x128xf32>
    %8 = arith.addf %6, %7 : vector<128x128xf32>
    %9 = arith.truncf %8 : vector<128x128xf32> to vector<128x128xbf16>
    %10 = arith.index_cast %3 : i32 to index
    %c0_4 = arith.constant 0 : index
    %11 = vector.load %arg4[%10, %c0_4] : memref<512x128xbf16, #tpu.memory_space<vmem>>, vector<128x128xbf16>
    tpu.vector_store %arg4[%10, %c0_4], %9 {strides = array<i32>} : memref<512x128xbf16, #tpu.memory_space<vmem>>, vector<128x128xbf16>,
    %c1_i32 = arith.constant 1 : i32
    %c128_i32_5 = arith.constant 128 : i32
    %12 = arith.muli %c1_i32, %c128_i32_5 : i32
    %13 = tpu.assume_multiple %12, 128 : i32
    %14 = arith.index_cast %13 : i32 to index
    %c0_6 = arith.constant 0 : index
    %15 = vector.load %arg1[%14, %c0_6] : memref<512x36xbf16, #tpu.memory_space<vmem>>, vector<128x36xbf16>
    %cst_7 = arith.constant dense<0.000000e+00> : vector<128x128xf32>
    %16 = tpu.matmul %15, %0, %cst_7 {dimension_numbers = #tpu.dot_dimension_numbers<[1], [0], [0], [1], [0, 0, 1, 1], [], []>} : vector<128x36xbf16>, vector<36x128xbf16>, vector<128x128xf32> -> vector<128x128xf32>
    %17 = vector.broadcast %1 : vector<1x128xf32> to vector<128x128xf32>
    %18 = arith.addf %16, %17 : vector<128x128xf32>
    %19 = arith.truncf %18 : vector<128x128xf32> to vector<128x128xbf16>
    %20 = arith.index_cast %13 : i32 to index
    %c0_8 = arith.constant 0 : index
    %21 = vector.load %arg4[%20, %c0_8] : memref<512x128xbf16, #tpu.memory_space<vmem>>, vector<128x128xbf16>
    tpu.vector_store %arg4[%20, %c0_8], %19 {strides = array<i32>} : memref<512x128xbf16, #tpu.memory_space<vmem>>, vector<128x128xbf16>,
    %c2_i32 = arith.constant 2 : i32
    %c128_i32_9 = arith.constant 128 : i32
    %22 = arith.muli %c2_i32, %c128_i32_9 : i32
    %23 = tpu.assume_multiple %22, 128 : i32
    %24 = arith.index_cast %23 : i32 to index
    %c0_10 = arith.constant 0 : index
    %25 = vector.load %arg1[%24, %c0_10] : memref<512x36xbf16, #tpu.memory_space<vmem>>, vector<128x36xbf16>
    %cst_11 = arith.constant dense<0.000000e+00> : vector<128x128xf32>
    %26 = tpu.matmul %25, %0, %cst_11 {dimension_numbers = #tpu.dot_dimension_numbers<[1], [0], [0], [1], [0, 0, 1, 1], [], []>} : vector<128x36xbf16>, vector<36x128xbf16>, vector<128x128xf32> -> vector<128x128xf32>
    %27 = vector.broadcast %1 : vector<1x128xf32> to vector<128x128xf32>
    %28 = arith.addf %26, %27 : vector<128x128xf32>
    %29 = arith.truncf %28 : vector<128x128xf32> to vector<128x128xbf16>
    %30 = arith.index_cast %23 : i32 to index
    %c0_12 = arith.constant 0 : index
    %31 = vector.load %arg4[%30, %c0_12] : memref<512x128xbf16, #tpu.memory_space<vmem>>, vector<128x128xbf16>
    tpu.vector_store %arg4[%30, %c0_12], %29 {strides = array<i32>} : memref<512x128xbf16, #tpu.memory_space<vmem>>, vector<128x128xbf16>,
    %c3_i32 = arith.constant 3 : i32
    %c128_i32_13 = arith.constant 128 : i32
    %32 = arith.muli %c3_i32, %c128_i32_13 : i32
    %33 = tpu.assume_multiple %32, 128 : i32
    %34 = arith.index_cast %33 : i32 to index
    %c0_14 = arith.constant 0 : index
    %35 = vector.load %arg1[%34, %c0_14] : memref<512x36xbf16, #tpu.memory_space<vmem>>, vector<128x36xbf16>
    %cst_15 = arith.constant dense<0.000000e+00> : vector<128x128xf32>
    %36 = tpu.matmul %35, %0, %cst_15 {dimension_numbers = #tpu.dot_dimension_numbers<[1], [0], [0], [1], [0, 0, 1, 1], [], []>} : vector<128x36xbf16>, vector<36x128xbf16>, vector<128x128xf32> -> vector<128x128xf32>
    %37 = vector.broadcast %1 : vector<1x128xf32> to vector<128x128xf32>
    %38 = arith.addf %36, %37 : vector<128x128xf32>
    %39 = arith.truncf %38 : vector<128x128xf32> to vector<128x128xbf16>
    %40 = arith.index_cast %33 : i32 to index
    %c0_16 = arith.constant 0 : index
    %41 = vector.load %arg4[%40, %c0_16] : memref<512x128xbf16, #tpu.memory_space<vmem>>, vector<128x128xbf16>
    tpu.vector_store %arg4[%40, %c0_16], %39 {strides = array<i32>} : memref<512x128xbf16, #tpu.memory_space<vmem>>, vector<128x128xbf16>,
    %c4_i32 = arith.constant 4 : i32
    return
  }
  func.func @transform_0(%arg0: i32) -> (i32, i32) {
    %c0_i32 = arith.constant 0 : i32
    %c0_i32_0 = arith.constant 0 : i32
    return %arg0, %c0_i32 : i32, i32
  }
  func.func @transform_1(%arg0: i32) -> (i32, i32) {
    %c0_i32 = arith.constant 0 : i32
    %c0_i32_0 = arith.constant 0 : i32
    %c0_i32_1 = arith.constant 0 : i32
    return %c0_i32, %c0_i32_0 : i32, i32
  }
  func.func @transform_2(%arg0: i32) -> (i32, i32) {
    %c0_i32 = arith.constant 0 : i32
    %c0_i32_0 = arith.constant 0 : i32
    %c0_i32_1 = arith.constant 0 : i32
    return %c0_i32, %c0_i32_0 : i32, i32
  }
  func.func @transform_3(%arg0: i32) -> (i32, i32) {
    %c0_i32 = arith.constant 0 : i32
    %c0_i32_0 = arith.constant 0 : i32
    return %arg0, %c0_i32 : i32, i32
  }
}

</mosaic_0001>

<llo_original>
// kernel: tpu_custom_call.1
$region0: #{tpu_custom_call.1}
  #allocation0 [shape = 'u32[]', space=smem, size = 0x4, offset = 0x4, fixed_abs, tag = 'smem constant byte address 0x4 - core index']
  #allocation1 [shape = 'u32[144,128]{1,0:T(1,128)}', space=vmem, size = 0x12000, scoped, tag = 'internal scratch']
  %s0 = inlined_call_operand.vmem [shape: bf16[512,36], index: 0, kind: input, shape index: {}]
  %s1 = inlined_call_operand.vmem [shape: bf16[36,128], index: 1, kind: input, shape index: {}]
  %s2 = inlined_call_operand.vmem [shape: f32[1,128], index: 2, kind: input, shape index: {}]
  %s3 = inlined_call_operand.hbm [shape: bf16[512,128], index: 3, kind: output, shape index: {}]
  %s4 = sld [smem:[#allocation0]]
  $region22: #{tpu_custom_call.1} parent=0
    _
  %s6 = ssub.s32 1, %s4
  %s7 = scalar_select 0, %s6, %s4
  $region1: #{tpu_custom_call.1} parent=0
    #allocation2 [shape = 'u8[131072]{0}', space=vmem, size = 0x20000, scoped, tag = 'output window, operand 0, single buffered']
    #allocation3 [shape = 's32[1]{0}', space=sflag, size = 0x4, scoped, tag = 'scoped memory for tpu_custom_call.1']
    %8 = vsyncpa [#allocation3], 0
    // Predicated region
    $region2: #{tpu_custom_call.1} parent=1 // pred_check
      _
    $region3: #{tpu_custom_call.1} parent=1 // pred_check_branch
      %10 = sbr.rel (0) target = $region5
    $region4: #{tpu_custom_call.1} parent=1 // pred_region
      _
    $region5: #{tpu_custom_call.1} parent=1 // pred_fallthru
      _
    // Predicated region
    $region6: #{tpu_custom_call.1} parent=1 // pred_check
      _
    $region7: #{tpu_custom_call.1} parent=1 // pred_check_branch
      %12 = sbr.rel (0) target = $region9
    $region8: #{tpu_custom_call.1} parent=1 // pred_region
      _
    $region9: #{tpu_custom_call.1} parent=1 // pred_fallthru
      _
    // Predicated region
    $region10: #{tpu_custom_call.1} parent=1 // pred_check
      _
    $region11: #{tpu_custom_call.1} parent=1 // pred_check_branch
      %14 = sbr.rel (0) target = $region13
    $region12: #{tpu_custom_call.1} parent=1 // pred_region
      _
    $region13: #{tpu_custom_call.1} parent=1 // pred_fallthru
      _
    %v16 = vld [vmem:[%s1] sm:$0xf]
    %v17 = vld [vmem:[%s1 + $0x4] sm:$0xf]
    %v18 = vld [vmem:[%s1 + $0x8] sm:$0xf]
    %v19 = vld [vmem:[%s1 + $0xc] sm:$0xf]
    %v20 = vld [vmem:[%s1 + $0x10] sm:$0x3]
    %v21 = vld [vmem:[%s2] sm:$0x1]
    %v22 = vld [vmem:[%s0] sm:$0xf]
    %v23 = vld [vmem:[%s0 + $0x4] sm:$0xf]
    %v24 = vld [vmem:[%s0 + $0x8] sm:$0xf]
    %v25 = vld [vmem:[%s0 + $0xc] sm:$0xf]
    %v26 = vld [vmem:[%s0 + $0x10] sm:$0xf]
    %v27 = vld [vmem:[%s0 + $0x14] sm:$0xf]
    %v28 = vld [vmem:[%s0 + $0x18] sm:$0xf]
    %v29 = vld [vmem:[%s0 + $0x1c] sm:$0xf]
    %v30 = vld [vmem:[%s0 + $0x20] sm:$0xf]
    %v31 = vld [vmem:[%s0 + $0x24] sm:$0xf]
    %v32 = vld [vmem:[%s0 + $0x28] sm:$0xf]
    %v33 = vld [vmem:[%s0 + $0x2c] sm:$0xf]
    %v34 = vld [vmem:[%s0 + $0x30] sm:$0xf]
    %v35 = vld [vmem:[%s0 + $0x34] sm:$0xf]
    %v36 = vld [vmem:[%s0 + $0x38] sm:$0xf]
    %v37 = vld [vmem:[%s0 + $0x3c] sm:$0xf]
    %v39 = vlaneseq
    %v40 = vshrl.u32 %v39, 7
    %v41 = vsub.s32 0, %v40
    %v42 = vrot.slane %v21, %v41
    %v60 = vunpack.c.l.b16 %v22
    %v61 = vunpack.c.l.b16 %v23
    %v62 = vunpack.c.l.b16 %v24
    %v63 = vunpack.c.l.b16 %v25
    %v64 = vunpack.c.l.b16 %v26
    %v65 = vunpack.c.l.b16 %v27
    %v66 = vunpack.c.l.b16 %v28
    %v67 = vunpack.c.l.b16 %v29
    %v68 = vunpack.c.l.b16 %v30
    %v69 = vunpack.c.l.b16 %v31
    %v70 = vunpack.c.l.b16 %v32
    %v71 = vunpack.c.l.b16 %v33
    %v72 = vunpack.c.l.b16 %v34
    %v73 = vunpack.c.l.b16 %v35
    %v74 = vunpack.c.l.b16 %v36
    %v75 = vunpack.c.l.b16 %v37
    %v76 = vpack.c.b16 %v61, %v60
    %v77 = vpack.c.b16 %v63, %v62
    %v78 = vpack.c.b16 %v65, %v64
    %v79 = vpack.c.b16 %v67, %v66
    %v80 = vpack.c.b16 %v69, %v68
    %v81 = vpack.c.b16 %v71, %v70
    %v82 = vpack.c.b16 %v73, %v72
    %v83 = vpack.c.b16 %v75, %v74
    %v89 = vunpack.c.l.b16 %v16
    %v90 = vunpack.c.l.b16 %v17
    %v91 = vunpack.c.l.b16 %v18
    %v92 = vunpack.c.l.b16 %v19
    %v93 = vunpack.c.l.b16 %v20
    %v94 = vpack.c.b16 %v90, %v89
    %v95 = vpack.c.b16 %v92, %v91
    %v96 = vpack.c.b16 %v93, %v93
    %vm99 = vcmask 293888
    %v101 = vsel %vm99, %v76, 0
    %v104 = vsel %vm99, %v77, 0
    %v107 = vsel %vm99, %v78, 0
    %v110 = vsel %vm99, %v79, 0
    %v113 = vsel %vm99, %v80, 0
    %v116 = vsel %vm99, %v81, 0
    %v119 = vsel %vm99, %v82, 0
    %v122 = vsel %vm99, %v83, 0
    %vm124 = vcmask 1041408
    %v126 = vsel %vm124, %v96, 0
    %128 = vmatprep.subr.bf16.mxu0 0
    %129 = vmatpush1.bf16.msra.mxu0 %v94
    %130 = vmatprep.subr.bf16.mxu0 0
    %131 = vmatpush1.bf16.msra.mxu0 %v95
    %132 = vmatprep.subr.bf16.mxu0 0
    %133 = vmatpush1.bf16.msra.mxu0 %v126
    %134 = vmatprep.subr.bf16.mxu0 0
    %135 = vmatpush1.bf16.msra.mxu0 0
    %136 = vmatprep.subr.bf16.mxu0 0
    %137 = vmatpush1.bf16.msra.mxu0 0
    %138 = vmatprep.subr.bf16.mxu0 0
    %139 = vmatpush1.bf16.msra.mxu0 0
    %140 = vmatprep.subr.bf16.mxu0 0
    %141 = vmatpush1.bf16.msra.mxu0 0
    %142 = vmatprep.subr.bf16.mxu0 0
    %143 = vmatpush1.bf16.msra.mxu0 0
    %144 = vmatprep.subr.bf16.mxu0 0
    %145 = vmatpush1.bf16.msra.mxu0 0
    %146 = vmatprep.subr.bf16.mxu0 0
    %147 = vmatpush1.bf16.msra.mxu0 0
    %148 = vmatprep.subr.bf16.mxu0 0
    %149 = vmatpush1.bf16.msra.mxu0 0
    %150 = vmatprep.subr.bf16.mxu0 0
    %151 = vmatpush1.bf16.msra.mxu0 0
    %152 = vmatprep.subr.bf16.mxu0 0
    %153 = vmatpush1.bf16.msra.mxu0 0
    %154 = vmatprep.subr.bf16.mxu0 0
    %155 = vmatpush1.bf16.msra.mxu0 0
    %156 = vmatprep.subr.bf16.mxu0 0
    %157 = vmatpush1.bf16.msra.mxu0 0
    %158 = vmatprep.subr.bf16.mxu0 0
    %159 = vmatpush1.bf16.msra.mxu0 0
    %160 = vmatprep.mubr.bf16.mxu0 0
    %161 = vmatmul.mubr.bf16.gmra.mrb[0].mxu0 %v101
    %v162 = vpop.f32.mrb[0].mxu0
    %v163 = vadd.f32 %v42, %v162
    %v164 = vpop.f32.mrb[0].mxu0
    %v165 = vpop.f32.mrb[0].mxu0
    %v166 = vadd.f32 %v42, %v165
    %v167 = vpop.f32.mrb[0].mxu0
    %168 = vmatprep.mubr.bf16.mxu0 0
    %169 = vmatmul.mubr.bf16.gmra.mrb[0].mxu0 %v104
    %v170 = vpop.f32.mrb[0].mxu0
    %v171 = vadd.f32 %v42, %v170
    %v172 = vpop.f32.mrb[0].mxu0
    %v173 = vpop.f32.mrb[0].mxu0
    %v174 = vadd.f32 %v42, %v173
    %v175 = vpop.f32.mrb[0].mxu0
    %176 = vmatprep.mubr.bf16.mxu0 0
    %177 = vmatmul.mubr.bf16.gmra.mrb[0].mxu0 %v107
    %v178 = vpop.f32.mrb[0].mxu0
    %v179 = vadd.f32 %v42, %v178
    %v180 = vpop.f32.mrb[0].mxu0
    %v181 = vpop.f32.mrb[0].mxu0
    %v182 = vadd.f32 %v42, %v181
    %v183 = vpop.f32.mrb[0].mxu0
    %184 = vmatprep.mubr.bf16.mxu0 0
    %185 = vmatmul.mubr.bf16.gmra.mrb[0].mxu0 %v110
    %v186 = vpop.f32.mrb[0].mxu0
    %v187 = vadd.f32 %v42, %v186
    %v188 = vpop.f32.mrb[0].mxu0
    %v189 = vpop.f32.mrb[0].mxu0
    %v190 = vadd.f32 %v42, %v189
    %v191 = vpop.f32.mrb[0].mxu0
    %192 = vmatprep.mubr.bf16.mxu0 0
    %193 = vmatmul.mubr.bf16.gmra.mrb[0].mxu0 %v113
    %v194 = vpop.f32.mrb[0].mxu0
    %v195 = vadd.f32 %v42, %v194
    %v196 = vpop.f32.mrb[0].mxu0
    %v197 = vpop.f32.mrb[0].mxu0
    %v198 = vadd.f32 %v42, %v197
    %v199 = vpop.f32.mrb[0].mxu0
    %200 = vmatprep.mubr.bf16.mxu0 0
    %201 = vmatmul.mubr.bf16.gmra.mrb[0].mxu0 %v116
    %v202 = vpop.f32.mrb[0].mxu0
    %v203 = vadd.f32 %v42, %v202
    %v204 = vpop.f32.mrb[0].mxu0
    %v205 = vpop.f32.mrb[0].mxu0
    %v206 = vadd.f32 %v42, %v205
    %v207 = vpop.f32.mrb[0].mxu0
    %208 = vmatprep.mubr.bf16.mxu0 0
    %209 = vmatmul.mubr.bf16.gmra.mrb[0].mxu0 %v119
    %v210 = vpop.f32.mrb[0].mxu0
    %v211 = vadd.f32 %v42, %v210
    %v212 = vpop.f32.mrb[0].mxu0
    %v213 = vpop.f32.mrb[0].mxu0
    %v214 = vadd.f32 %v42, %v213
    %v215 = vpop.f32.mrb[0].mxu0
    %216 = vmatprep.mubr.bf16.mxu0 0
    %217 = vmatmul.mubr.bf16.gmra.mrb[0].mxu0 %v122
    %v218 = vpop.f32.mrb[0].mxu0
    %v219 = vadd.f32 %v42, %v218
    %v220 = vpop.f32.mrb[0].mxu0
    %v221 = vpop.f32.mrb[0].mxu0
    %v222 = vadd.f32 %v42, %v221
    %v223 = vpop.f32.mrb[0].mxu0
    %224 = vdwg.mxu0
    %v225 = vpack.c.bf16 %v166, %v163
    %v226 = vpack.c.bf16 %v174, %v171
    %v227 = vpack.c.bf16 %v182, %v179
    %v228 = vpack.c.bf16 %v190, %v187
    %v229 = vpack.c.bf16 %v198, %v195
    %v230 = vpack.c.bf16 %v206, %v203
    %v231 = vpack.c.bf16 %v214, %v211
    %v232 = vpack.c.bf16 %v222, %v219
    %v241 = vunpack.c.l.b16 %v225
    %v242 = vunpack.c.h.b16 %v225
    %v243 = vunpack.c.l.b16 %v226
    %v244 = vunpack.c.h.b16 %v226
    %v245 = vunpack.c.l.b16 %v227
    %v246 = vunpack.c.h.b16 %v227
    %v247 = vunpack.c.l.b16 %v228
    %v248 = vunpack.c.h.b16 %v228
    %v249 = vunpack.c.l.b16 %v229
    %v250 = vunpack.c.h.b16 %v229
    %v251 = vunpack.c.l.b16 %v230
    %v252 = vunpack.c.h.b16 %v230
    %v253 = vunpack.c.l.b16 %v231
    %v254 = vunpack.c.h.b16 %v231
    %v255 = vunpack.c.l.b16 %v232
    %v256 = vunpack.c.h.b16 %v232
    %v257 = vpack.c.b16 %v241, %v241
    %v258 = vpack.c.b16 %v242, %v242
    %v259 = vpack.c.b16 %v243, %v243
    %v260 = vpack.c.b16 %v244, %v244
    %v261 = vpack.c.b16 %v245, %v245
    %v262 = vpack.c.b16 %v246, %v246
    %v263 = vpack.c.b16 %v247, %v247
    %v264 = vpack.c.b16 %v248, %v248
    %v265 = vpack.c.b16 %v249, %v249
    %v266 = vpack.c.b16 %v250, %v250
    %v267 = vpack.c.b16 %v251, %v251
    %v268 = vpack.c.b16 %v252, %v252
    %v269 = vpack.c.b16 %v253, %v253
    %v270 = vpack.c.b16 %v254, %v254
    %v271 = vpack.c.b16 %v255, %v255
    %v272 = vpack.c.b16 %v256, %v256
    %289 = vst [vmem:[#allocation2] sm:$0xf] %v257
    %290 = vst [vmem:[#allocation2 + $0x4] sm:$0xf] %v258
    %291 = vst [vmem:[#allocation2 + $0x8] sm:$0xf] %v259
    %292 = vst [vmem:[#allocation2 + $0xc] sm:$0xf] %v260
    %293 = vst [vmem:[#allocation2 + $0x10] sm:$0xf] %v261
    %294 = vst [vmem:[#allocation2 + $0x14] sm:$0xf] %v262
    %295 = vst [vmem:[#allocation2 + $0x18] sm:$0xf] %v263
    %296 = vst [vmem:[#allocation2 + $0x1c] sm:$0xf] %v264
    %297 = vst [vmem:[#allocation2 + $0x20] sm:$0xf] %v265
    %298 = vst [vmem:[#allocation2 + $0x24] sm:$0xf] %v266
    %299 = vst [vmem:[#allocation2 + $0x28] sm:$0xf] %v267
    %300 = vst [vmem:[#allocation2 + $0x2c] sm:$0xf] %v268
    %301 = vst [vmem:[#allocation2 + $0x30] sm:$0xf] %v269
    %302 = vst [vmem:[#allocation2 + $0x34] sm:$0xf] %v270
    %303 = vst [vmem:[#allocation2 + $0x38] sm:$0xf] %v271
    %304 = vst [vmem:[#allocation2 + $0x3c] sm:$0xf] %v272
    %s305 = scalar_lea.vmem %s0, 64
    %v306 = vld [vmem:[%s305] sm:$0xf]
    %v307 = vld [vmem:[%s305 + $0x4] sm:$0xf]
    %v308 = vld [vmem:[%s305 + $0x8] sm:$0xf]
    %v309 = vld [vmem:[%s305 + $0xc] sm:$0xf]
    %v310 = vld [vmem:[%s305 + $0x10] sm:$0xf]
    %v311 = vld [vmem:[%s305 + $0x14] sm:$0xf]
    %v312 = vld [vmem:[%s305 + $0x18] sm:$0xf]
    %v313 = vld [vmem:[%s305 + $0x1c] sm:$0xf]
    %v314 = vld [vmem:[%s305 + $0x20] sm:$0xf]
    %v315 = vld [vmem:[%s305 + $0x24] sm:$0xf]
    %v316 = vld [vmem:[%s305 + $0x28] sm:$0xf]
    %v317 = vld [vmem:[%s305 + $0x2c] sm:$0xf]
    %v318 = vld [vmem:[%s305 + $0x30] sm:$0xf]
    %v319 = vld [vmem:[%s305 + $0x34] sm:$0xf]
    %v320 = vld [vmem:[%s305 + $0x38] sm:$0xf]
    %v321 = vld [vmem:[%s305 + $0x3c] sm:$0xf]
    %v338 = vunpack.c.l.b16 %v306
    %v339 = vunpack.c.l.b16 %v307
    %v340 = vunpack.c.l.b16 %v308
    %v341 = vunpack.c.l.b16 %v309
    %v342 = vunpack.c.l.b16 %v310
    %v343 = vunpack.c.l.b16 %v311
    %v344 = vunpack.c.l.b16 %v312
    %v345 = vunpack.c.l.b16 %v313
    %v346 = vunpack.c.l.b16 %v314
    %v347 = vunpack.c.l.b16 %v315
    %v348 = vunpack.c.l.b16 %v316
    %v349 = vunpack.c.l.b16 %v317
    %v350 = vunpack.c.l.b16 %v318
    %v351 = vunpack.c.l.b16 %v319
    %v352 = vunpack.c.l.b16 %v320
    %v353 = vunpack.c.l.b16 %v321
    %v354 = vpack.c.b16 %v339, %v338
    %v355 = vpack.c.b16 %v341, %v340
    %v356 = vpack.c.b16 %v343, %v342
    %v357 = vpack.c.b16 %v345, %v344
    %v358 = vpack.c.b16 %v347, %v346
    %v359 = vpack.c.b16 %v349, %v348
    %v360 = vpack.c.b16 %v351, %v350
    %v361 = vpack.c.b16 %v353, %v352
    %v363 = vsel %vm99, %v354, 0
    %v366 = vsel %vm99, %v355, 0
    %v369 = vsel %vm99, %v356, 0
    %v372 = vsel %vm99, %v357, 0
    %v375 = vsel %vm99, %v358, 0
    %v378 = vsel %vm99, %v359, 0
    %v381 = vsel %vm99, %v360, 0
    %v384 = vsel %vm99, %v361, 0
    %386 = vmatprep.subr.bf16.mxu0 0
    %387 = vmatpush1.bf16.msra.mxu0 %v94
    %388 = vmatprep.subr.bf16.mxu0 0
    %389 = vmatpush1.bf16.msra.mxu0 %v95
    %390 = vmatprep.subr.bf16.mxu0 0
    %391 = vmatpush1.bf16.msra.mxu0 %v126
    %392 = vmatprep.subr.bf16.mxu0 0
    %393 = vmatpush1.bf16.msra.mxu0 0
    %394 = vmatprep.subr.bf16.mxu0 0
    %395 = vmatpush1.bf16.msra.mxu0 0
    %396 = vmatprep.subr.bf16.mxu0 0
    %397 = vmatpush1.bf16.msra.mxu0 0
    %398 = vmatprep.subr.bf16.mxu0 0
    %399 = vmatpush1.bf16.msra.mxu0 0
    %400 = vmatprep.subr.bf16.mxu0 0
    %401 = vmatpush1.bf16.msra.mxu0 0
    %402 = vmatprep.subr.bf16.mxu0 0
    %403 = vmatpush1.bf16.msra.mxu0 0
    %404 = vmatprep.subr.bf16.mxu0 0
    %405 = vmatpush1.bf16.msra.mxu0 0
    %406 = vmatprep.subr.bf16.mxu0 0
    %407 = vmatpush1.bf16.msra.mxu0 0
    %408 = vmatprep.subr.bf16.mxu0 0
    %409 = vmatpush1.bf16.msra.mxu0 0
    %410 = vmatprep.subr.bf16.mxu0 0
    %411 = vmatpush1.bf16.msra.mxu0 0
    %412 = vmatprep.subr.bf16.mxu0 0
    %413 = vmatpush1.bf16.msra.mxu0 0
    %414 = vmatprep.subr.bf16.mxu0 0
    %415 = vmatpush1.bf16.msra.mxu0 0
    %416 = vmatprep.subr.bf16.mxu0 0
    %417 = vmatpush1.bf16.msra.mxu0 0
    %418 = vmatprep.mubr.bf16.mxu0 0
    %419 = vmatmul.mubr.bf16.gmra.mrb[0].mxu0 %v363
    %v420 = vpop.f32.mrb[0].mxu0
    %v421 = vadd.f32 %v42, %v420
    %v422 = vpop.f32.mrb[0].mxu0
    %v423 = vpop.f32.mrb[0].mxu0
    %v424 = vadd.f32 %v42, %v423
    %v425 = vpop.f32.mrb[0].mxu0
    %426 = vmatprep.mubr.bf16.mxu0 0
    %427 = vmatmul.mubr.bf16.gmra.mrb[0].mxu0 %v366
    %v428 = vpop.f32.mrb[0].mxu0
    %v429 = vadd.f32 %v42, %v428
    %v430 = vpop.f32.mrb[0].mxu0
    %v431 = vpop.f32.mrb[0].mxu0
    %v432 = vadd.f32 %v42, %v431
    %v433 = vpop.f32.mrb[0].mxu0
    %434 = vmatprep.mubr.bf16.mxu0 0
    %435 = vmatmul.mubr.bf16.gmra.mrb[0].mxu0 %v369
    %v436 = vpop.f32.mrb[0].mxu0
    %v437 = vadd.f32 %v42, %v436
    %v438 = vpop.f32.mrb[0].mxu0
    %v439 = vpop.f32.mrb[0].mxu0
    %v440 = vadd.f32 %v42, %v439
    %v441 = vpop.f32.mrb[0].mxu0
    %442 = vmatprep.mubr.bf16.mxu0 0
    %443 = vmatmul.mubr.bf16.gmra.mrb[0].mxu0 %v372
    %v444 = vpop.f32.mrb[0].mxu0
    %v445 = vadd.f32 %v42, %v444
    %v446 = vpop.f32.mrb[0].mxu0
    %v447 = vpop.f32.mrb[0].mxu0
    %v448 = vadd.f32 %v42, %v447
    %v449 = vpop.f32.mrb[0].mxu0
    %450 = vmatprep.mubr.bf16.mxu0 0
    %451 = vmatmul.mubr.bf16.gmra.mrb[0].mxu0 %v375
    %v452 = vpop.f32.mrb[0].mxu0
    %v453 = vadd.f32 %v42, %v452
    %v454 = vpop.f32.mrb[0].mxu0
    %v455 = vpop.f32.mrb[0].mxu0
    %v456 = vadd.f32 %v42, %v455
    %v457 = vpop.f32.mrb[0].mxu0
    %458 = vmatprep.mubr.bf16.mxu0 0
    %459 = vmatmul.mubr.bf16.gmra.mrb[0].mxu0 %v378
    %v460 = vpop.f32.mrb[0].mxu0
    %v461 = vadd.f32 %v42, %v460
    %v462 = vpop.f32.mrb[0].mxu0
    %v463 = vpop.f32.mrb[0].mxu0
    %v464 = vadd.f32 %v42, %v463
    %v465 = vpop.f32.mrb[0].mxu0
    %466 = vmatprep.mubr.bf16.mxu0 0
    %467 = vmatmul.mubr.bf16.gmra.mrb[0].mxu0 %v381
    %v468 = vpop.f32.mrb[0].mxu0
    %v469 = vadd.f32 %v42, %v468
    %v470 = vpop.f32.mrb[0].mxu0
    %v471 = vpop.f32.mrb[0].mxu0
    %v472 = vadd.f32 %v42, %v471
    %v473 = vpop.f32.mrb[0].mxu0
    %474 = vmatprep.mubr.bf16.mxu0 0
    %475 = vmatmul.mubr.bf16.gmra.mrb[0].mxu0 %v384
    %v476 = vpop.f32.mrb[0].mxu0
    %v477 = vadd.f32 %v42, %v476
    %v478 = vpop.f32.mrb[0].mxu0
    %v479 = vpop.f32.mrb[0].mxu0
    %v480 = vadd.f32 %v42, %v479
    %v481 = vpop.f32.mrb[0].mxu0
    %482 = vdwg.mxu0
    %v483 = vpack.c.bf16 %v424, %v421
    %v484 = vpack.c.bf16 %v432, %v429
    %v485 = vpack.c.bf16 %v440, %v437
    %v486 = vpack.c.bf16 %v448, %v445
    %v487 = vpack.c.bf16 %v456, %v453
    %v488 = vpack.c.bf16 %v464, %v461
    %v489 = vpack.c.bf16 %v472, %v469
    %v490 = vpack.c.bf16 %v480, %v477
    %v499 = vunpack.c.l.b16 %v483
    %v500 = vunpack.c.h.b16 %v483
    %v501 = vunpack.c.l.b16 %v484
    %v502 = vunpack.c.h.b16 %v484
    %v503 = vunpack.c.l.b16 %v485
    %v504 = vunpack.c.h.b16 %v485
    %v505 = vunpack.c.l.b16 %v486
    %v506 = vunpack.c.h.b16 %v486
    %v507 = vunpack.c.l.b16 %v487
    %v508 = vunpack.c.h.b16 %v487
    %v509 = vunpack.c.l.b16 %v488
    %v510 = vunpack.c.h.b16 %v488
    %v511 = vunpack.c.l.b16 %v489
    %v512 = vunpack.c.h.b16 %v489
    %v513 = vunpack.c.l.b16 %v490
    %v514 = vunpack.c.h.b16 %v490
    %v515 = vpack.c.b16 %v499, %v499
    %v516 = vpack.c.b16 %v500, %v500
    %v517 = vpack.c.b16 %v501, %v501
    %v518 = vpack.c.b16 %v502, %v502
    %v519 = vpack.c.b16 %v503, %v503
    %v520 = vpack.c.b16 %v504, %v504
    %v521 = vpack.c.b16 %v505, %v505
    %v522 = vpack.c.b16 %v506, %v506
    %v523 = vpack.c.b16 %v507, %v507
    %v524 = vpack.c.b16 %v508, %v508
    %v525 = vpack.c.b16 %v509, %v509
    %v526 = vpack.c.b16 %v510, %v510
    %v527 = vpack.c.b16 %v511, %v511
    %v528 = vpack.c.b16 %v512, %v512
    %v529 = vpack.c.b16 %v513, %v513
    %v530 = vpack.c.b16 %v514, %v514
    %s547 = scalar_lea.vmem [#allocation2], 64
    %548 = vst [vmem:[%s547] sm:$0xf] %v515
    %549 = vst [vmem:[%s547 + $0x4] sm:$0xf] %v516
    %550 = vst [vmem:[%s547 + $0x8] sm:$0xf] %v517
    %551 = vst [vmem:[%s547 + $0xc] sm:$0xf] %v518
    %552 = vst [vmem:[%s547 + $0x10] sm:$0xf] %v519
    %553 = vst [vmem:[%s547 + $0x14] sm:$0xf] %v520
    %554 = vst [vmem:[%s547 + $0x18] sm:$0xf] %v521
    %555 = vst [vmem:[%s547 + $0x1c] sm:$0xf] %v522
    %556 = vst [vmem:[%s547 + $0x20] sm:$0xf] %v523
    %557 = vst [vmem:[%s547 + $0x24] sm:$0xf] %v524
    %558 = vst [vmem:[%s547 + $0x28] sm:$0xf] %v525
    %559 = vst [vmem:[%s547 + $0x2c] sm:$0xf] %v526
    %560 = vst [vmem:[%s547 + $0x30] sm:$0xf] %v527
    %561 = vst [vmem:[%s547 + $0x34] sm:$0xf] %v528
    %562 = vst [vmem:[%s547 + $0x38] sm:$0xf] %v529
    %563 = vst [vmem:[%s547 + $0x3c] sm:$0xf] %v530
    %s564 = scalar_lea.vmem %s0, 128
    %v565 = vld [vmem:[%s564] sm:$0xf]
    %v566 = vld [vmem:[%s564 + $0x4] sm:$0xf]
    %v567 = vld [vmem:[%s564 + $0x8] sm:$0xf]
    %v568 = vld [vmem:[%s564 + $0xc] sm:$0xf]
    %v569 = vld [vmem:[%s564 + $0x10] sm:$0xf]
    %v570 = vld [vmem:[%s564 + $0x14] sm:$0xf]
    %v571 = vld [vmem:[%s564 + $0x18] sm:$0xf]
    %v572 = vld [vmem:[%s564 + $0x1c] sm:$0xf]
    %v573 = vld [vmem:[%s564 + $0x20] sm:$0xf]
    %v574 = vld [vmem:[%s564 + $0x24] sm:$0xf]
    %v575 = vld [vmem:[%s564 + $0x28] sm:$0xf]
    %v576 = vld [vmem:[%s564 + $0x2c] sm:$0xf]
    %v577 = vld [vmem:[%s564 + $0x30] sm:$0xf]
    %v578 = vld [vmem:[%s564 + $0x34] sm:$0xf]
    %v579 = vld [vmem:[%s564 + $0x38] sm:$0xf]
    %v580 = vld [vmem:[%s564 + $0x3c] sm:$0xf]
    %v597 = vunpack.c.l.b16 %v565
    %v598 = vunpack.c.l.b16 %v566
    %v599 = vunpack.c.l.b16 %v567
    %v600 = vunpack.c.l.b16 %v568
    %v601 = vunpack.c.l.b16 %v569
    %v602 = vunpack.c.l.b16 %v570
    %v603 = vunpack.c.l.b16 %v571
    %v604 = vunpack.c.l.b16 %v572
    %v605 = vunpack.c.l.b16 %v573
    %v606 = vunpack.c.l.b16 %v574
    %v607 = vunpack.c.l.b16 %v575
    %v608 = vunpack.c.l.b16 %v576
    %v609 = vunpack.c.l.b16 %v577
    %v610 = vunpack.c.l.b16 %v578
    %v611 = vunpack.c.l.b16 %v579
    %v612 = vunpack.c.l.b16 %v580
    %v613 = vpack.c.b16 %v598, %v597
    %v614 = vpack.c.b16 %v600, %v599
    %v615 = vpack.c.b16 %v602, %v601
    %v616 = vpack.c.b16 %v604, %v603
    %v617 = vpack.c.b16 %v606, %v605
    %v618 = vpack.c.b16 %v608, %v607
    %v619 = vpack.c.b16 %v610, %v609
    %v620 = vpack.c.b16 %v612, %v611
    %v622 = vsel %vm99, %v613, 0
    %v625 = vsel %vm99, %v614, 0
    %v628 = vsel %vm99, %v615, 0
    %v631 = vsel %vm99, %v616, 0
    %v634 = vsel %vm99, %v617, 0
    %v637 = vsel %vm99, %v618, 0
    %v640 = vsel %vm99, %v619, 0
    %v643 = vsel %vm99, %v620, 0
    %645 = vmatprep.subr.bf16.mxu0 0
    %646 = vmatpush1.bf16.msra.mxu0 %v94
    %647 = vmatprep.subr.bf16.mxu0 0
    %648 = vmatpush1.bf16.msra.mxu0 %v95
    %649 = vmatprep.subr.bf16.mxu0 0
    %650 = vmatpush1.bf16.msra.mxu0 %v126
    %651 = vmatprep.subr.bf16.mxu0 0
    %652 = vmatpush1.bf16.msra.mxu0 0
    %653 = vmatprep.subr.bf16.mxu0 0
    %654 = vmatpush1.bf16.msra.mxu0 0
    %655 = vmatprep.subr.bf16.mxu0 0
    %656 = vmatpush1.bf16.msra.mxu0 0
    %657 = vmatprep.subr.bf16.mxu0 0
    %658 = vmatpush1.bf16.msra.mxu0 0
    %659 = vmatprep.subr.bf16.mxu0 0
    %660 = vmatpush1.bf16.msra.mxu0 0
    %661 = vmatprep.subr.bf16.mxu0 0
    %662 = vmatpush1.bf16.msra.mxu0 0
    %663 = vmatprep.subr.bf16.mxu0 0
    %664 = vmatpush1.bf16.msra.mxu0 0
    %665 = vmatprep.subr.bf16.mxu0 0
    %666 = vmatpush1.bf16.msra.mxu0 0
    %667 = vmatprep.subr.bf16.mxu0 0
    %668 = vmatpush1.bf16.msra.mxu0 0
    %669 = vmatprep.subr.bf16.mxu0 0
    %670 = vmatpush1.bf16.msra.mxu0 0
    %671 = vmatprep.subr.bf16.mxu0 0
    %672 = vmatpush1.bf16.msra.mxu0 0
    %673 = vmatprep.subr.bf16.mxu0 0
    %674 = vmatpush1.bf16.msra.mxu0 0
    %675 = vmatprep.subr.bf16.mxu0 0
    %676 = vmatpush1.bf16.msra.mxu0 0
    %677 = vmatprep.mubr.bf16.mxu0 0
    %678 = vmatmul.mubr.bf16.gmra.mrb[0].mxu0 %v622
    %v679 = vpop.f32.mrb[0].mxu0
    %v680 = vadd.f32 %v42, %v679
    %v681 = vpop.f32.mrb[0].mxu0
    %v682 = vpop.f32.mrb[0].mxu0
    %v683 = vadd.f32 %v42, %v682
    %v684 = vpop.f32.mrb[0].mxu0
    %685 = vmatprep.mubr.bf16.mxu0 0
    %686 = vmatmul.mubr.bf16.gmra.mrb[0].mxu0 %v625
    %v687 = vpop.f32.mrb[0].mxu0
    %v688 = vadd.f32 %v42, %v687
    %v689 = vpop.f32.mrb[0].mxu0
    %v690 = vpop.f32.mrb[0].mxu0
    %v691 = vadd.f32 %v42, %v690
    %v692 = vpop.f32.mrb[0].mxu0
    %693 = vmatprep.mubr.bf16.mxu0 0
    %694 = vmatmul.mubr.bf16.gmra.mrb[0].mxu0 %v628
    %v695 = vpop.f32.mrb[0].mxu0
    %v696 = vadd.f32 %v42, %v695
    %v697 = vpop.f32.mrb[0].mxu0
    %v698 = vpop.f32.mrb[0].mxu0
    %v699 = vadd.f32 %v42, %v698
    %v700 = vpop.f32.mrb[0].mxu0
    %701 = vmatprep.mubr.bf16.mxu0 0
    %702 = vmatmul.mubr.bf16.gmra.mrb[0].mxu0 %v631
    %v703 = vpop.f32.mrb[0].mxu0
    %v704 = vadd.f32 %v42, %v703
    %v705 = vpop.f32.mrb[0].mxu0
    %v706 = vpop.f32.mrb[0].mxu0
    %v707 = vadd.f32 %v42, %v706
    %v708 = vpop.f32.mrb[0].mxu0
    %709 = vmatprep.mubr.bf16.mxu0 0
    %710 = vmatmul.mubr.bf16.gmra.mrb[0].mxu0 %v634
    %v711 = vpop.f32.mrb[0].mxu0
    %v712 = vadd.f32 %v42, %v711
    %v713 = vpop.f32.mrb[0].mxu0
    %v714 = vpop.f32.mrb[0].mxu0
    %v715 = vadd.f32 %v42, %v714
    %v716 = vpop.f32.mrb[0].mxu0
    %717 = vmatprep.mubr.bf16.mxu0 0
    %718 = vmatmul.mubr.bf16.gmra.mrb[0].mxu0 %v637
    %v719 = vpop.f32.mrb[0].mxu0
    %v720 = vadd.f32 %v42, %v719
    %v721 = vpop.f32.mrb[0].mxu0
    %v722 = vpop.f32.mrb[0].mxu0
    %v723 = vadd.f32 %v42, %v722
    %v724 = vpop.f32.mrb[0].mxu0
    %725 = vmatprep.mubr.bf16.mxu0 0
    %726 = vmatmul.mubr.bf16.gmra.mrb[0].mxu0 %v640
    %v727 = vpop.f32.mrb[0].mxu0
    %v728 = vadd.f32 %v42, %v727
    %v729 = vpop.f32.mrb[0].mxu0
    %v730 = vpop.f32.mrb[0].mxu0
    %v731 = vadd.f32 %v42, %v730
    %v732 = vpop.f32.mrb[0].mxu0
    %733 = vmatprep.mubr.bf16.mxu0 0
    %734 = vmatmul.mubr.bf16.gmra.mrb[0].mxu0 %v643
    %v735 = vpop.f32.mrb[0].mxu0
    %v736 = vadd.f32 %v42, %v735
    %v737 = vpop.f32.mrb[0].mxu0
    %v738 = vpop.f32.mrb[0].mxu0
    %v739 = vadd.f32 %v42, %v738
    %v740 = vpop.f32.mrb[0].mxu0
    %741 = vdwg.mxu0
    %v742 = vpack.c.bf16 %v683, %v680
    %v743 = vpack.c.bf16 %v691, %v688
    %v744 = vpack.c.bf16 %v699, %v696
    %v745 = vpack.c.bf16 %v707, %v704
    %v746 = vpack.c.bf16 %v715, %v712
    %v747 = vpack.c.bf16 %v723, %v720
    %v748 = vpack.c.bf16 %v731, %v728
    %v749 = vpack.c.bf16 %v739, %v736
    %v758 = vunpack.c.l.b16 %v742
    %v759 = vunpack.c.h.b16 %v742
    %v760 = vunpack.c.l.b16 %v743
    %v761 = vunpack.c.h.b16 %v743
    %v762 = vunpack.c.l.b16 %v744
    %v763 = vunpack.c.h.b16 %v744
    %v764 = vunpack.c.l.b16 %v745
    %v765 = vunpack.c.h.b16 %v745
    %v766 = vunpack.c.l.b16 %v746
    %v767 = vunpack.c.h.b16 %v746
    %v768 = vunpack.c.l.b16 %v747
    %v769 = vunpack.c.h.b16 %v747
    %v770 = vunpack.c.l.b16 %v748
    %v771 = vunpack.c.h.b16 %v748
    %v772 = vunpack.c.l.b16 %v749
    %v773 = vunpack.c.h.b16 %v749
    %v774 = vpack.c.b16 %v758, %v758
    %v775 = vpack.c.b16 %v759, %v759
    %v776 = vpack.c.b16 %v760, %v760
    %v777 = vpack.c.b16 %v761, %v761
    %v778 = vpack.c.b16 %v762, %v762
    %v779 = vpack.c.b16 %v763, %v763
    %v780 = vpack.c.b16 %v764, %v764
    %v781 = vpack.c.b16 %v765, %v765
    %v782 = vpack.c.b16 %v766, %v766
    %v783 = vpack.c.b16 %v767, %v767
    %v784 = vpack.c.b16 %v768, %v768
    %v785 = vpack.c.b16 %v769, %v769
    %v786 = vpack.c.b16 %v770, %v770
    %v787 = vpack.c.b16 %v771, %v771
    %v788 = vpack.c.b16 %v772, %v772
    %v789 = vpack.c.b16 %v773, %v773
    %s806 = scalar_lea.vmem [#allocation2], 128
    %807 = vst [vmem:[%s806] sm:$0xf] %v774
    %808 = vst [vmem:[%s806 + $0x4] sm:$0xf] %v775
    %809 = vst [vmem:[%s806 + $0x8] sm:$0xf] %v776
    %810 = vst [vmem:[%s806 + $0xc] sm:$0xf] %v777
    %811 = vst [vmem:[%s806 + $0x10] sm:$0xf] %v778
    %812 = vst [vmem:[%s806 + $0x14] sm:$0xf] %v779
    %813 = vst [vmem:[%s806 + $0x18] sm:$0xf] %v780
    %814 = vst [vmem:[%s806 + $0x1c] sm:$0xf] %v781
    %815 = vst [vmem:[%s806 + $0x20] sm:$0xf] %v782
    %816 = vst [vmem:[%s806 + $0x24] sm:$0xf] %v783
    %817 = vst [vmem:[%s806 + $0x28] sm:$0xf] %v784
    %818 = vst [vmem:[%s806 + $0x2c] sm:$0xf] %v785
    %819 = vst [vmem:[%s806 + $0x30] sm:$0xf] %v786
    %820 = vst [vmem:[%s806 + $0x34] sm:$0xf] %v787
    %821 = vst [vmem:[%s806 + $0x38] sm:$0xf] %v788
    %822 = vst [vmem:[%s806 + $0x3c] sm:$0xf] %v789
    %s823 = scalar_lea.vmem %s0, 192
    %v824 = vld [vmem:[%s823] sm:$0xf]
    %v825 = vld [vmem:[%s823 + $0x4] sm:$0xf]
    %v826 = vld [vmem:[%s823 + $0x8] sm:$0xf]
    %v827 = vld [vmem:[%s823 + $0xc] sm:$0xf]
    %v828 = vld [vmem:[%s823 + $0x10] sm:$0xf]
    %v829 = vld [vmem:[%s823 + $0x14] sm:$0xf]
    %v830 = vld [vmem:[%s823 + $0x18] sm:$0xf]
    %v831 = vld [vmem:[%s823 + $0x1c] sm:$0xf]
    %v832 = vld [vmem:[%s823 + $0x20] sm:$0xf]
    %v833 = vld [vmem:[%s823 + $0x24] sm:$0xf]
    %v834 = vld [vmem:[%s823 + $0x28] sm:$0xf]
    %v835 = vld [vmem:[%s823 + $0x2c] sm:$0xf]
    %v836 = vld [vmem:[%s823 + $0x30] sm:$0xf]
    %v837 = vld [vmem:[%s823 + $0x34] sm:$0xf]
    %v838 = vld [vmem:[%s823 + $0x38] sm:$0xf]
    %v839 = vld [vmem:[%s823 + $0x3c] sm:$0xf]
    %v856 = vunpack.c.l.b16 %v824
    %v857 = vunpack.c.l.b16 %v825
    %v858 = vunpack.c.l.b16 %v826
    %v859 = vunpack.c.l.b16 %v827
    %v860 = vunpack.c.l.b16 %v828
    %v861 = vunpack.c.l.b16 %v829
    %v862 = vunpack.c.l.b16 %v830
    %v863 = vunpack.c.l.b16 %v831
    %v864 = vunpack.c.l.b16 %v832
    %v865 = vunpack.c.l.b16 %v833
    %v866 = vunpack.c.l.b16 %v834
    %v867 = vunpack.c.l.b16 %v835
    %v868 = vunpack.c.l.b16 %v836
    %v869 = vunpack.c.l.b16 %v837
    %v870 = vunpack.c.l.b16 %v838
    %v871 = vunpack.c.l.b16 %v839
    %v872 = vpack.c.b16 %v857, %v856
    %v873 = vpack.c.b16 %v859, %v858
    %v874 = vpack.c.b16 %v861, %v860
    %v875 = vpack.c.b16 %v863, %v862
    %v876 = vpack.c.b16 %v865, %v864
    %v877 = vpack.c.b16 %v867, %v866
    %v878 = vpack.c.b16 %v869, %v868
    %v879 = vpack.c.b16 %v871, %v870
    %v881 = vsel %vm99, %v872, 0
    %v884 = vsel %vm99, %v873, 0
    %v887 = vsel %vm99, %v874, 0
    %v890 = vsel %vm99, %v875, 0
    %v893 = vsel %vm99, %v876, 0
    %v896 = vsel %vm99, %v877, 0
    %v899 = vsel %vm99, %v878, 0
    %v902 = vsel %vm99, %v879, 0
    %904 = vmatprep.subr.bf16.mxu0 0
    %905 = vmatpush1.bf16.msra.mxu0 %v94
    %906 = vmatprep.subr.bf16.mxu0 0
    %907 = vmatpush1.bf16.msra.mxu0 %v95
    %908 = vmatprep.subr.bf16.mxu0 0
    %909 = vmatpush1.bf16.msra.mxu0 %v126
    %910 = vmatprep.subr.bf16.mxu0 0
    %911 = vmatpush1.bf16.msra.mxu0 0
    %912 = vmatprep.subr.bf16.mxu0 0
    %913 = vmatpush1.bf16.msra.mxu0 0
    %914 = vmatprep.subr.bf16.mxu0 0
    %915 = vmatpush1.bf16.msra.mxu0 0
    %916 = vmatprep.subr.bf16.mxu0 0
    %917 = vmatpush1.bf16.msra.mxu0 0
    %918 = vmatprep.subr.bf16.mxu0 0
    %919 = vmatpush1.bf16.msra.mxu0 0
    %920 = vmatprep.subr.bf16.mxu0 0
    %921 = vmatpush1.bf16.msra.mxu0 0
    %922 = vmatprep.subr.bf16.mxu0 0
    %923 = vmatpush1.bf16.msra.mxu0 0
    %924 = vmatprep.subr.bf16.mxu0 0
    %925 = vmatpush1.bf16.msra.mxu0 0
    %926 = vmatprep.subr.bf16.mxu0 0
    %927 = vmatpush1.bf16.msra.mxu0 0
    %928 = vmatprep.subr.bf16.mxu0 0
    %929 = vmatpush1.bf16.msra.mxu0 0
    %930 = vmatprep.subr.bf16.mxu0 0
    %931 = vmatpush1.bf16.msra.mxu0 0
    %932 = vmatprep.subr.bf16.mxu0 0
    %933 = vmatpush1.bf16.msra.mxu0 0
    %934 = vmatprep.subr.bf16.mxu0 0
    %935 = vmatpush1.bf16.msra.mxu0 0
    %936 = vmatprep.mubr.bf16.mxu0 0
    %937 = vmatmul.mubr.bf16.gmra.mrb[0].mxu0 %v881
    %v938 = vpop.f32.mrb[0].mxu0
    %v939 = vadd.f32 %v42, %v938
    %v940 = vpop.f32.mrb[0].mxu0
    %v941 = vpop.f32.mrb[0].mxu0
    %v942 = vadd.f32 %v42, %v941
    %v943 = vpop.f32.mrb[0].mxu0
    %944 = vmatprep.mubr.bf16.mxu0 0
    %945 = vmatmul.mubr.bf16.gmra.mrb[0].mxu0 %v884
    %v946 = vpop.f32.mrb[0].mxu0
    %v947 = vadd.f32 %v42, %v946
    %v948 = vpop.f32.mrb[0].mxu0
    %v949 = vpop.f32.mrb[0].mxu0
    %v950 = vadd.f32 %v42, %v949
    %v951 = vpop.f32.mrb[0].mxu0
    %952 = vmatprep.mubr.bf16.mxu0 0
    %953 = vmatmul.mubr.bf16.gmra.mrb[0].mxu0 %v887
    %v954 = vpop.f32.mrb[0].mxu0
    %v955 = vadd.f32 %v42, %v954
    %v956 = vpop.f32.mrb[0].mxu0
    %v957 = vpop.f32.mrb[0].mxu0
    %v958 = vadd.f32 %v42, %v957
    %v959 = vpop.f32.mrb[0].mxu0
    %960 = vmatprep.mubr.bf16.mxu0 0
    %961 = vmatmul.mubr.bf16.gmra.mrb[0].mxu0 %v890
    %v962 = vpop.f32.mrb[0].mxu0
    %v963 = vadd.f32 %v42, %v962
    %v964 = vpop.f32.mrb[0].mxu0
    %v965 = vpop.f32.mrb[0].mxu0
    %v966 = vadd.f32 %v42, %v965
    %v967 = vpop.f32.mrb[0].mxu0
    %968 = vmatprep.mubr.bf16.mxu0 0
    %969 = vmatmul.mubr.bf16.gmra.mrb[0].mxu0 %v893
    %v970 = vpop.f32.mrb[0].mxu0
    %v971 = vadd.f32 %v42, %v970
    %v972 = vpop.f32.mrb[0].mxu0
    %v973 = vpop.f32.mrb[0].mxu0
    %v974 = vadd.f32 %v42, %v973
    %v975 = vpop.f32.mrb[0].mxu0
    %976 = vmatprep.mubr.bf16.mxu0 0
    %977 = vmatmul.mubr.bf16.gmra.mrb[0].mxu0 %v896
    %v978 = vpop.f32.mrb[0].mxu0
    %v979 = vadd.f32 %v42, %v978
    %v980 = vpop.f32.mrb[0].mxu0
    %v981 = vpop.f32.mrb[0].mxu0
    %v982 = vadd.f32 %v42, %v981
    %v983 = vpop.f32.mrb[0].mxu0
    %984 = vmatprep.mubr.bf16.mxu0 0
    %985 = vmatmul.mubr.bf16.gmra.mrb[0].mxu0 %v899
    %v986 = vpop.f32.mrb[0].mxu0
    %v987 = vadd.f32 %v42, %v986
    %v988 = vpop.f32.mrb[0].mxu0
    %v989 = vpop.f32.mrb[0].mxu0
    %v990 = vadd.f32 %v42, %v989
    %v991 = vpop.f32.mrb[0].mxu0
    %992 = vmatprep.mubr.bf16.mxu0 0
    %993 = vmatmul.mubr.bf16.gmra.mrb[0].mxu0 %v902
    %v994 = vpop.f32.mrb[0].mxu0
    %v995 = vadd.f32 %v42, %v994
    %v996 = vpop.f32.mrb[0].mxu0
    %v997 = vpop.f32.mrb[0].mxu0
    %v998 = vadd.f32 %v42, %v997
    %v999 = vpop.f32.mrb[0].mxu0
    %1000 = vdwg.mxu0
    %v1001 = vpack.c.bf16 %v942, %v939
    %v1002 = vpack.c.bf16 %v950, %v947
    %v1003 = vpack.c.bf16 %v958, %v955
    %v1004 = vpack.c.bf16 %v966, %v963
    %v1005 = vpack.c.bf16 %v974, %v971
    %v1006 = vpack.c.bf16 %v982, %v979
    %v1007 = vpack.c.bf16 %v990, %v987
    %v1008 = vpack.c.bf16 %v998, %v995
    %v1017 = vunpack.c.l.b16 %v1001
    %v1018 = vunpack.c.h.b16 %v1001
    %v1019 = vunpack.c.l.b16 %v1002
    %v1020 = vunpack.c.h.b16 %v1002
    %v1021 = vunpack.c.l.b16 %v1003
    %v1022 = vunpack.c.h.b16 %v1003
    %v1023 = vunpack.c.l.b16 %v1004
    %v1024 = vunpack.c.h.b16 %v1004
    %v1025 = vunpack.c.l.b16 %v1005
    %v1026 = vunpack.c.h.b16 %v1005
    %v1027 = vunpack.c.l.b16 %v1006
    %v1028 = vunpack.c.h.b16 %v1006
    %v1029 = vunpack.c.l.b16 %v1007
    %v1030 = vunpack.c.h.b16 %v1007
    %v1031 = vunpack.c.l.b16 %v1008
    %v1032 = vunpack.c.h.b16 %v1008
    %v1033 = vpack.c.b16 %v1017, %v1017
    %v1034 = vpack.c.b16 %v1018, %v1018
    %v1035 = vpack.c.b16 %v1019, %v1019
    %v1036 = vpack.c.b16 %v1020, %v1020
    %v1037 = vpack.c.b16 %v1021, %v1021
    %v1038 = vpack.c.b16 %v1022, %v1022
    %v1039 = vpack.c.b16 %v1023, %v1023
    %v1040 = vpack.c.b16 %v1024, %v1024
    %v1041 = vpack.c.b16 %v1025, %v1025
    %v1042 = vpack.c.b16 %v1026, %v1026
    %v1043 = vpack.c.b16 %v1027, %v1027
    %v1044 = vpack.c.b16 %v1028, %v1028
    %v1045 = vpack.c.b16 %v1029, %v1029
    %v1046 = vpack.c.b16 %v1030, %v1030
    %v1047 = vpack.c.b16 %v1031, %v1031
    %v1048 = vpack.c.b16 %v1032, %v1032
    %s1065 = scalar_lea.vmem [#allocation2], 192
    %1066 = vst [vmem:[%s1065] sm:$0xf] %v1033
    %1067 = vst [vmem:[%s1065 + $0x4] sm:$0xf] %v1034
    %1068 = vst [vmem:[%s1065 + $0x8] sm:$0xf] %v1035
    %1069 = vst [vmem:[%s1065 + $0xc] sm:$0xf] %v1036
    %1070 = vst [vmem:[%s1065 + $0x10] sm:$0xf] %v1037
    %1071 = vst [vmem:[%s1065 + $0x14] sm:$0xf] %v1038
    %1072 = vst [vmem:[%s1065 + $0x18] sm:$0xf] %v1039
    %1073 = vst [vmem:[%s1065 + $0x1c] sm:$0xf] %v1040
    %1074 = vst [vmem:[%s1065 + $0x20] sm:$0xf] %v1041
    %1075 = vst [vmem:[%s1065 + $0x24] sm:$0xf] %v1042
    %1076 = vst [vmem:[%s1065 + $0x28] sm:$0xf] %v1043
    %1077 = vst [vmem:[%s1065 + $0x2c] sm:$0xf] %v1044
    %1078 = vst [vmem:[%s1065 + $0x30] sm:$0xf] %v1045
    %1079 = vst [vmem:[%s1065 + $0x34] sm:$0xf] %v1046
    %1080 = vst [vmem:[%s1065 + $0x38] sm:$0xf] %v1047
    %1081 = vst [vmem:[%s1065 + $0x3c] sm:$0xf] %v1048
    // Predicated region
    $region14: #{tpu_custom_call.1} parent=1 // pred_check
      _
    $region15: #{tpu_custom_call.1} parent=1 // pred_check_branch
      %1083 = sbr.rel (0) target = $region17
    $region16: #{tpu_custom_call.1} parent=1 // pred_region
      %s1085 = ssub.s32 4096, 4096
      %1086 = vsyncadd [#allocation3], %s1085
      %s1087 = sshll.u32 [#allocation2], 4
      %s1088 = int_to_ptr.vmem [resolvable:$true] %s1087
      %1093 = dma.vmem_to_hbm [thread:$0]  %s1088, 4096, %s3, [#allocation3], 64, 64, 4
    $region17: #{tpu_custom_call.1} parent=1 // pred_fallthru
      _
    // Predicated region
    $region18: #{tpu_custom_call.1} parent=1 // pred_check
      _
    $region19: #{tpu_custom_call.1} parent=1 // pred_check_branch
      %1095 = sbr.rel (0) target = $region21
    $region20: #{tpu_custom_call.1} parent=1 // pred_region
      %1096 = dma.done [#allocation3], 4096
    $region21: #{tpu_custom_call.1} parent=1 // pred_fallthru
      _
    %1097 = vsyncpa [#allocation3], 1

</llo_original>
